<compile_context>
chip_gen: v7x
topology: tpu7x:2x2x1
jax: 0.10.0
libtpu: 0.0.40
codegen_flags: <defaults>
</compile_context>

<pallas_src>
import functools

import jax
import jax.numpy as jnp
from jax.experimental import pallas as pl
from jax.experimental.pallas import tpu as pltpu

H = W = 14
HW = H * W            # 196  (matches nn.Linear(14*14, 1))
C_ENC = 384           # output channels of densenet161 features[0:8]


def _deep_pix_bis_head_kernel(enc_ref, w_dec_ref, w_lin_ref, bias_ref, dec_ref, op_ref):
    # enc_ref block: (B_TILE, C, HW) in native dtype; weights are full-array VMEM blocks;
    # both scalar biases live in one SMEM vector: bias_ref = [b_dec, b_lin].
    enc = enc_ref[...].astype(jnp.float32)                     # (B, C, HW) upcast in VMEM
    w_dec = w_dec_ref[...].astype(jnp.float32)                 # (1, C, 1)
    b_dec = bias_ref[0]
    b_lin = bias_ref[1]

    # dec = Conv2d(384, 1, kernel_size=1): per-pixel channel reduction on VPU/XLU.
    dec_logits = jnp.sum(enc * w_dec, axis=1) + b_dec          # (B, HW), lane-dense
    dec = jax.nn.sigmoid(dec_logits)
    dec_ref[...] = dec.astype(dec_ref.dtype)

    # op = sigmoid(Linear(14*14 -> 1)(dec_flat)): broadcast-mul + lane reduce (no MXU round trip).
    w_lin = w_lin_ref[...].astype(jnp.float32)                 # (1, HW)
    op_logit = jnp.sum(dec * w_lin, axis=-1, keepdims=True) + b_lin   # (B, 1)
    op_ref[...] = jax.nn.sigmoid(op_logit).astype(op_ref.dtype)


@functools.partial(jax.jit, static_argnames=("b_tile",))
def _deep_pix_bis_head_impl(enc_nchw, w_dec, b_dec, w_lin, b_lin, *, b_tile):
    N = enc_nchw.shape[0]
    # NCHW -> (N, C, HW): contiguous reshape, a bitcast under jit (HW index = h*14 + w, same
    # flatten order as dec.view(-1, 14*14) in PyTorch). No dtype cast here -> no extra HBM traffic.
    enc_flat = enc_nchw.reshape(N, C_ENC, HW)

    # Batch tile satisfying the (8,128) block rules: either b_tile == N (single grid step) or a
    # multiple of 8.  No jnp.pad: Pallas masks the ragged edge block (OOB writes dropped).
    if N <= b_tile:
        b_tile = N
    else:
        b_tile = max(8, (b_tile // 8) * 8)
    grid = (pl.cdiv(N, b_tile),)

    w_dec3 = w_dec.reshape(1, C_ENC, 1).astype(jnp.float32)    # from conv weight (1, 384, 1, 1)
    w_lin2 = w_lin.reshape(1, HW).astype(jnp.float32)          # from linear weight (1, 196)
    bias = jnp.concatenate(
        [jnp.ravel(b_dec), jnp.ravel(b_lin)]
    ).astype(jnp.float32)                                      # (2,) -> SMEM

    dec_out, op_out = pl.pallas_call(
        _deep_pix_bis_head_kernel,
        out_shape=(
            jax.ShapeDtypeStruct((N, HW), jnp.float32),
            jax.ShapeDtypeStruct((N, 1), jnp.float32),
        ),
        grid=grid,
        in_specs=[
            pl.BlockSpec((b_tile, C_ENC, HW), lambda i: (i, 0, 0)),
            pl.BlockSpec((1, C_ENC, 1), lambda i: (0, 0, 0)),
            pl.BlockSpec((1, HW), lambda i: (0, 0)),
            pl.BlockSpec(memory_space=pltpu.MemorySpace.SMEM),
        ],
        out_specs=(
            pl.BlockSpec((b_tile, HW), lambda i: (i, 0)),
            pl.BlockSpec((b_tile, 1), lambda i: (i, 0)),
        ),
        compiler_params=pltpu.CompilerParams(
            dimension_semantics=("parallel",),                 # independent batch tiles (megacore)
            vmem_limit_bytes=48 * 1024 * 1024,                 # safe on v7x (64 MiB) and v5e/v6e
        ),
    )(enc_flat, w_dec3, w_lin2, bias)

    dec = dec_out.reshape(N, 1, H, W)                          # (N, 1, 14, 14), NCHW like PyTorch
    return dec, op_out                                         # op: (N, 1)


def deep_pix_bis_head(enc_nchw, w_dec, b_dec, w_lin, b_lin, *, b_tile=32):
    """enc_nchw: (N, 384, 14, 14) encoder features (NCHW, like PyTorch, any float dtype).

    Returns:
      dec: (N, 1, 14, 14) sigmoid binary map (float32)
      op : (N, 1)         final binary score  (float32)
    """
    return _deep_pix_bis_head_impl(enc_nchw, w_dec, b_dec, w_lin, b_lin, b_tile=b_tile)


def _reference(enc_nchw, w_dec, b_dec, w_lin, b_lin):
    """Plain-JAX reference mirroring the PyTorch head exactly."""
    N = enc_nchw.shape[0]
    x = enc_nchw.astype(jnp.float32)                           # (N, C, H, W)
    # 1x1 conv: out[n,0,h,w] = sum_c x[n,c,h,w] * W[0,c,0,0] + b[0]
    dec = jnp.einsum("nchw,c->nhw", x, w_dec.reshape(C_ENC).astype(jnp.float32)) + b_dec.reshape(())
    dec = jax.nn.sigmoid(dec)[:, None, :, :]                   # (N, 1, 14, 14)
    dec_flat = dec.reshape(N, HW)
    op = jax.nn.sigmoid(dec_flat @ w_lin.reshape(HW, 1) + b_lin.reshape(1, 1))
    return dec, op


if __name__ == "__main__":
    key = jax.random.PRNGKey(0)
    k_enc, k_wd, k_bd, k_wl, k_bl = jax.random.split(key, 5)

    # Deterministic synthetic parameters (shapes match nn.Conv2d(384,1,1) and nn.Linear(196,1)).
    w_dec = 0.05 * jax.random.normal(k_wd, (1, C_ENC, 1, 1), dtype=jnp.float32)
    b_dec = 0.01 * jax.random.normal(k_bd, (1,), dtype=jnp.float32)
    w_lin = 0.05 * jax.random.normal(k_wl, (1, HW), dtype=jnp.float32)
    b_lin = 0.01 * jax.random.normal(k_bl, (1,), dtype=jnp.float32)

    # Case 1: small batch, single grid step (b_tile collapses to N).
    N1 = 2
    enc1 = jax.random.normal(k_enc, (N1, C_ENC, H, W), dtype=jnp.float32)
    dec1, op1 = deep_pix_bis_head(enc1, w_dec, b_dec, w_lin, b_lin)
    jax.block_until_ready((dec1, op1))
    dec1_ref, op1_ref = _reference(enc1, w_dec, b_dec, w_lin, b_lin)
    assert dec1.shape == (N1, 1, H, W) and op1.shape == (N1, 1)
    assert jnp.allclose(dec1, dec1_ref, atol=1e-5, rtol=1e-5)
    assert jnp.allclose(op1, op1_ref, atol=1e-5, rtol=1e-5)

    # Case 2: multi-step grid with a ragged edge block (N=10, b_tile=8) -> exercises the
    # pad-free masked-edge path.
    N2 = 10
    enc2 = jax.random.normal(jax.random.fold_in(k_enc, 1), (N2, C_ENC, H, W), dtype=jnp.float32)
    dec2, op2 = deep_pix_bis_head(enc2, w_dec, b_dec, w_lin, b_lin, b_tile=8)
    jax.block_until_ready((dec2, op2))
    dec2_ref, op2_ref = _reference(enc2, w_dec, b_dec, w_lin, b_lin)
    assert dec2.shape == (N2, 1, H, W) and op2.shape == (N2, 1)
    assert jnp.allclose(dec2, dec2_ref, atol=1e-5, rtol=1e-5)
    assert jnp.allclose(op2, op2_ref, atol=1e-5, rtol=1e-5)

    # Case 3: bf16 encoder features go through the kernel natively (half the HBM traffic);
    # compute is still f32 inside the kernel.
    N3 = 4
    enc3 = jax.random.normal(jax.random.fold_in(k_enc, 2), (N3, C_ENC, H, W)).astype(jnp.bfloat16)
    dec3, op3 = deep_pix_bis_head(enc3, w_dec, b_dec, w_lin, b_lin)
    jax.block_until_ready((dec3, op3))
    dec3_ref, op3_ref = _reference(enc3, w_dec, b_dec, w_lin, b_lin)
    assert dec3.shape == (N3, 1, H, W) and op3.shape == (N3, 1)
    assert jnp.allclose(dec3, dec3_ref, atol=1e-4, rtol=1e-4)
    assert jnp.allclose(op3, op3_ref, atol=1e-4, rtol=1e-4)

    print("KERNEL_OK")
</pallas_src>

<mosaic_0001>
module attributes {stable_mosaic.version = 11 : i64} {
  func.func @_deep_pix_bis_head_kernel(%arg0: i32, %arg1: memref<2x384x196xf32, #tpu.memory_space<vmem>>, %arg2: memref<1x384x1xf32, #tpu.memory_space<vmem>>, %arg3: memref<1x196xf32, #tpu.memory_space<vmem>>, %arg4: memref<2xf32, #tpu.memory_space<smem>>, %arg5: memref<2x196xf32, #tpu.memory_space<vmem>>, %arg6: memref<2x1xf32, #tpu.memory_space<vmem>>) attributes {dimension_semantics = [#tpu.dimension_semantics<parallel>], iteration_bounds = array<i64: 1>, scalar_prefetch = 0 : i64, scratch_operands = 0 : i64, tpu.core_type = #tpu.core_type<tc>, window_params = [{transform_indices = @transform_0, window_bounds = array<i64: 2, 384, 196>}, {pipeline_mode = #tpu.pipeline_mode<synchronous>, transform_indices = @transform_1, window_bounds = array<i64: 1, 384, 1>}, {pipeline_mode = #tpu.pipeline_mode<synchronous>, transform_indices = @transform_2, window_bounds = array<i64: 1, 196>}, {transform_indices = @transform_3, window_bounds = array<i64: 2>}, {transform_indices = @transform_4, window_bounds = array<i64: 2, 196>}, {transform_indices = @transform_5, window_bounds = array<i64: 2, 1>}]} {
    %c0 = arith.constant 0 : index
    %c0_0 = arith.constant 0 : index
    %c0_1 = arith.constant 0 : index
    %0 = vector.load %arg1[%c0, %c0_0, %c0_1] : memref<2x384x196xf32, #tpu.memory_space<vmem>>, vector<2x384x196xf32>
    %c0_2 = arith.constant 0 : index
    %c0_3 = arith.constant 0 : index
    %c0_4 = arith.constant 0 : index
    %1 = vector.load %arg2[%c0_2, %c0_3, %c0_4] : memref<1x384x1xf32, #tpu.memory_space<vmem>>, vector<1x384x1xf32>
    %c0_5 = arith.constant 0 : index
    %2 = memref.load %arg4[%c0_5] : memref<2xf32, #tpu.memory_space<smem>>
    %c1 = arith.constant 1 : index
    %3 = memref.load %arg4[%c1] : memref<2xf32, #tpu.memory_space<smem>>
    %4 = vector.broadcast %1 : vector<1x384x1xf32> to vector<2x384x196xf32>
    %5 = arith.mulf %0, %4 : vector<2x384x196xf32>
    %cst = arith.constant dense<0.000000e+00> : vector<2x196xf32>
    %6 = vector.multi_reduction <add>, %5, %cst [1] : vector<2x384x196xf32> to vector<2x196xf32>
    %7 = vector.broadcast %2 : f32 to vector<2x196xf32>
    %8 = arith.addf %6, %7 : vector<2x196xf32>
    %9 = arith.negf %8 : vector<2x196xf32>
    %10 = math.exp %9 : vector<2x196xf32>
    %cst_6 = arith.constant 1.000000e+00 : f32
    %11 = vector.broadcast %cst_6 : f32 to vector<2x196xf32>
    %12 = arith.addf %11, %10 : vector<2x196xf32>
    %13 = arith.divf %11, %12 : vector<2x196xf32>
    %c0_7 = arith.constant 0 : index
    %c0_8 = arith.constant 0 : index
    %14 = vector.load %arg5[%c0_7, %c0_8] : memref<2x196xf32, #tpu.memory_space<vmem>>, vector<2x196xf32>
    tpu.vector_store %arg5[%c0_7, %c0_8], %13 {strides = array<i32>} : memref<2x196xf32, #tpu.memory_space<vmem>>, vector<2x196xf32>,
    %c0_9 = arith.constant 0 : index
    %c0_10 = arith.constant 0 : index
    %15 = vector.load %arg3[%c0_9, %c0_10] : memref<1x196xf32, #tpu.memory_space<vmem>>, vector<1x196xf32>
    %16 = vector.broadcast %15 : vector<1x196xf32> to vector<2x196xf32>
    %17 = arith.mulf %13, %16 : vector<2x196xf32>
    %cst_11 = arith.constant dense<0.000000e+00> : vector<2xf32>
    %18 = vector.multi_reduction <add>, %17, %cst_11 [1] : vector<2x196xf32> to vector<2xf32>
    %19 = vector.shape_cast %18 : vector<2xf32> to vector<2x1xf32>
    %20 = vector.broadcast %3 : f32 to vector<2x1xf32>
    %21 = arith.addf %19, %20 : vector<2x1xf32>
    %22 = arith.negf %21 : vector<2x1xf32>
    %23 = math.exp %22 : vector<2x1xf32>
    %cst_12 = arith.constant 1.000000e+00 : f32
    %24 = vector.broadcast %cst_12 : f32 to vector<2x1xf32>
    %25 = arith.addf %24, %23 : vector<2x1xf32>
    %26 = arith.divf %24, %25 : vector<2x1xf32>
    %c0_13 = arith.constant 0 : index
    %c0_14 = arith.constant 0 : index
    %27 = vector.load %arg6[%c0_13, %c0_14] : memref<2x1xf32, #tpu.memory_space<vmem>>, vector<2x1xf32>
    tpu.vector_store %arg6[%c0_13, %c0_14], %26 {strides = array<i32>} : memref<2x1xf32, #tpu.memory_space<vmem>>, vector<2x1xf32>,
    return
  }
  func.func @transform_0(%arg0: i32) -> (i32, i32, i32) {
    %c0_i32 = arith.constant 0 : i32
    %c0_i32_0 = arith.constant 0 : i32
    %c0_i32_1 = arith.constant 0 : i32
    return %arg0, %c0_i32, %c0_i32_0 : i32, i32, i32
  }
  func.func @transform_1(%arg0: i32) -> (i32, i32, i32) {
    %c0_i32 = arith.constant 0 : i32
    %c0_i32_0 = arith.constant 0 : i32
    %c0_i32_1 = arith.constant 0 : i32
    %c0_i32_2 = arith.constant 0 : i32
    return %c0_i32, %c0_i32_0, %c0_i32_1 : i32, i32, i32
  }
  func.func @transform_2(%arg0: i32) -> (i32, i32) {
    %c0_i32 = arith.constant 0 : i32
    %c0_i32_0 = arith.constant 0 : i32
    %c0_i32_1 = arith.constant 0 : i32
    return %c0_i32, %c0_i32_0 : i32, i32
  }
  func.func @transform_3(%arg0: i32) -> i32 {
    %c0_i32 = arith.constant 0 : i32
    %c0_i32_0 = arith.constant 0 : i32
    return %c0_i32 : i32
  }
  func.func @transform_4(%arg0: i32) -> (i32, i32) {
    %c0_i32 = arith.constant 0 : i32
    %c0_i32_0 = arith.constant 0 : i32
    return %arg0, %c0_i32 : i32, i32
  }
  func.func @transform_5(%arg0: i32) -> (i32, i32) {
    %c0_i32 = arith.constant 0 : i32
    %c0_i32_0 = arith.constant 0 : i32
    return %arg0, %c0_i32 : i32, i32
  }
}

</mosaic_0001>

<llo_original>
// kernel: _deep_pix_bis_head_impl.1
$region0: #{_deep_pix_bis_head_impl.1}
  #allocation0 [shape = 'u32[]', space=smem, size = 0x4, offset = 0x4, fixed_abs, tag = 'smem constant byte address 0x4 - core index']
  #allocation1 [shape = 'u32[144,128]{1,0:T(1,128)}', space=vmem, size = 0x12000, scoped, tag = 'internal scratch']
  %s0 = inlined_call_operand.vmem [shape: f32[2,384,196], index: 0, kind: input, shape index: {}]
  %s1 = inlined_call_operand.vmem [shape: f32[1,384,1], index: 1, kind: input, shape index: {}]
  %s2 = inlined_call_operand.vmem [shape: f32[1,196], index: 2, kind: input, shape index: {}]
  %s3 = inlined_call_operand.vmem [shape: f32[2], index: 3, kind: input, shape index: {}]
  %s4 = inlined_call_operand.vmem [shape: f32[2,196], index: 4, kind: output, shape index: {0}]
  %s5 = inlined_call_operand.vmem [shape: f32[2,1], index: 5, kind: output, shape index: {1}]
  %6 = xla_tuple %s4, %s5
  %s7 = sld [smem:[#allocation0]]
  $region38: #{_deep_pix_bis_head_impl.1} parent=0
    _
  %s9 = ssub.s32 1, %s7
  %s10 = scalar_select 0, %s9, %s7
  $region1: #{_deep_pix_bis_head_impl.1} parent=0
    #allocation2 [shape = 'u8[512]{0}', space=smem, size = 0x200, scoped, tag = 'input window, operand 3, single buffered']
    #allocation3 [shape = 's32[1]{0}', space=sflag, size = 0x4, scoped, tag = 'scoped memory for _deep_pix_bis_head_impl.1']
    %11 = vsyncpa [#allocation3], 0
    // Predicated region
    $region2: #{_deep_pix_bis_head_impl.1} parent=1 // pred_check
      _
    $region3: #{_deep_pix_bis_head_impl.1} parent=1 // pred_check_branch
      %13 = sbr.rel (0) target = $region5
    $region4: #{_deep_pix_bis_head_impl.1} parent=1 // pred_region
      _
    $region5: #{_deep_pix_bis_head_impl.1} parent=1 // pred_fallthru
      _
    // Predicated region
    $region6: #{_deep_pix_bis_head_impl.1} parent=1 // pred_check
      _
    $region7: #{_deep_pix_bis_head_impl.1} parent=1 // pred_check_branch
      %15 = sbr.rel (0) target = $region9
    $region8: #{_deep_pix_bis_head_impl.1} parent=1 // pred_region
      _
    $region9: #{_deep_pix_bis_head_impl.1} parent=1 // pred_fallthru
      _
    // Predicated region
    $region10: #{_deep_pix_bis_head_impl.1} parent=1 // pred_check
      _
    $region11: #{_deep_pix_bis_head_impl.1} parent=1 // pred_check_branch
      %17 = sbr.rel (0) target = $region13
    $region12: #{_deep_pix_bis_head_impl.1} parent=1 // pred_region
      _
    $region13: #{_deep_pix_bis_head_impl.1} parent=1 // pred_fallthru
      _
    // Predicated region
    $region14: #{_deep_pix_bis_head_impl.1} parent=1 // pred_check
      _
    $region15: #{_deep_pix_bis_head_impl.1} parent=1 // pred_check_branch
      %19 = sbr.rel (0) target = $region17
    $region16: #{_deep_pix_bis_head_impl.1} parent=1 // pred_region
      %s21 = ssub.s32 16, 16
      %22 = vsyncadd [#allocation3], %s21
      %s24 = sshll.u32 %s3, 4
      %s25 = int_to_ptr.vmem [resolvable:$true] %s24
      %27 = dma.vmem_to_smem %s25, 16, [#allocation2], [#allocation3]
    $region17: #{_deep_pix_bis_head_impl.1} parent=1 // pred_fallthru
      _
    // Predicated region
    $region18: #{_deep_pix_bis_head_impl.1} parent=1 // pred_check
      _
    $region19: #{_deep_pix_bis_head_impl.1} parent=1 // pred_check_branch
      %29 = sbr.rel (0) target = $region21
    $region20: #{_deep_pix_bis_head_impl.1} parent=1 // pred_region
      %30 = dma.done [#allocation3], 16
    $region21: #{_deep_pix_bis_head_impl.1} parent=1 // pred_fallthru
      _
    %31 = sfence
    %v32 = vld [vmem:[%s0] sm:$0xff]
    %v33 = vld [vmem:[%s0 + $0x8] sm:$0xff]
    %v34 = vld [vmem:[%s0 + $0x10] sm:$0xff]
    %v35 = vld [vmem:[%s0 + $0x18] sm:$0xff]
    %v36 = vld [vmem:[%s0 + $0x20] sm:$0xff]
    %v37 = vld [vmem:[%s0 + $0x28] sm:$0xff]
    %v38 = vld [vmem:[%s0 + $0x30] sm:$0xff]
    %v39 = vld [vmem:[%s0 + $0x38] sm:$0xff]
    %v40 = vld [vmem:[%s0 + $0x40] sm:$0xff]
    %v41 = vld [vmem:[%s0 + $0x48] sm:$0xff]
    %v42 = vld [vmem:[%s0 + $0x50] sm:$0xff]
    %v43 = vld [vmem:[%s0 + $0x58] sm:$0xff]
    %v44 = vld [vmem:[%s0 + $0x60] sm:$0xff]
    %v45 = vld [vmem:[%s0 + $0x68] sm:$0xff]
    %v46 = vld [vmem:[%s0 + $0x70] sm:$0xff]
    %v47 = vld [vmem:[%s0 + $0x78] sm:$0xff]
    %v48 = vld [vmem:[%s0 + $0x80] sm:$0xff]
    %v49 = vld [vmem:[%s0 + $0x88] sm:$0xff]
    %v50 = vld [vmem:[%s0 + $0x90] sm:$0xff]
    %v51 = vld [vmem:[%s0 + $0x98] sm:$0xff]
    %v52 = vld [vmem:[%s0 + $0xa0] sm:$0xff]
    %v53 = vld [vmem:[%s0 + $0xa8] sm:$0xff]
    %v54 = vld [vmem:[%s0 + $0xb0] sm:$0xff]
    %v55 = vld [vmem:[%s0 + $0xb8] sm:$0xff]
    %v56 = vld [vmem:[%s0 + $0xc0] sm:$0xff]
    %v57 = vld [vmem:[%s0 + $0xc8] sm:$0xff]
    %v58 = vld [vmem:[%s0 + $0xd0] sm:$0xff]
    %v59 = vld [vmem:[%s0 + $0xd8] sm:$0xff]
    %v60 = vld [vmem:[%s0 + $0xe0] sm:$0xff]
    %v61 = vld [vmem:[%s0 + $0xe8] sm:$0xff]
    %v62 = vld [vmem:[%s0 + $0xf0] sm:$0xff]
    %v63 = vld [vmem:[%s0 + $0xf8] sm:$0xff]
    %v64 = vld [vmem:[%s0 + $0x100] sm:$0xff]
    %v65 = vld [vmem:[%s0 + $0x108] sm:$0xff]
    %v66 = vld [vmem:[%s0 + $0x110] sm:$0xff]
    %v67 = vld [vmem:[%s0 + $0x118] sm:$0xff]
    %v68 = vld [vmem:[%s0 + $0x120] sm:$0xff]
    %v69 = vld [vmem:[%s0 + $0x128] sm:$0xff]
    %v70 = vld [vmem:[%s0 + $0x130] sm:$0xff]
    %v71 = vld [vmem:[%s0 + $0x138] sm:$0xff]
    %v72 = vld [vmem:[%s0 + $0x140] sm:$0xff]
    %v73 = vld [vmem:[%s0 + $0x148] sm:$0xff]
    %v74 = vld [vmem:[%s0 + $0x150] sm:$0xff]
    %v75 = vld [vmem:[%s0 + $0x158] sm:$0xff]
    %v76 = vld [vmem:[%s0 + $0x160] sm:$0xff]
    %v77 = vld [vmem:[%s0 + $0x168] sm:$0xff]
    %v78 = vld [vmem:[%s0 + $0x170] sm:$0xff]
    %v79 = vld [vmem:[%s0 + $0x178] sm:$0xff]
    %v80 = vld [vmem:[%s0 + $0x180] sm:$0xff]
    %v81 = vld [vmem:[%s0 + $0x188] sm:$0xff]
    %v82 = vld [vmem:[%s0 + $0x190] sm:$0xff]
    %v83 = vld [vmem:[%s0 + $0x198] sm:$0xff]
    %v84 = vld [vmem:[%s0 + $0x1a0] sm:$0xff]
    %v85 = vld [vmem:[%s0 + $0x1a8] sm:$0xff]
    %v86 = vld [vmem:[%s0 + $0x1b0] sm:$0xff]
    %v87 = vld [vmem:[%s0 + $0x1b8] sm:$0xff]
    %v88 = vld [vmem:[%s0 + $0x1c0] sm:$0xff]
    %v89 = vld [vmem:[%s0 + $0x1c8] sm:$0xff]
    %v90 = vld [vmem:[%s0 + $0x1d0] sm:$0xff]
    %v91 = vld [vmem:[%s0 + $0x1d8] sm:$0xff]
    %v92 = vld [vmem:[%s0 + $0x1e0] sm:$0xff]
    %v93 = vld [vmem:[%s0 + $0x1e8] sm:$0xff]
    %v94 = vld [vmem:[%s0 + $0x1f0] sm:$0xff]
    %v95 = vld [vmem:[%s0 + $0x1f8] sm:$0xff]
    %v96 = vld [vmem:[%s0 + $0x200] sm:$0xff]
    %v97 = vld [vmem:[%s0 + $0x208] sm:$0xff]
    %v98 = vld [vmem:[%s0 + $0x210] sm:$0xff]
    %v99 = vld [vmem:[%s0 + $0x218] sm:$0xff]
    %v100 = vld [vmem:[%s0 + $0x220] sm:$0xff]
    %v101 = vld [vmem:[%s0 + $0x228] sm:$0xff]
    %v102 = vld [vmem:[%s0 + $0x230] sm:$0xff]
    %v103 = vld [vmem:[%s0 + $0x238] sm:$0xff]
    %v104 = vld [vmem:[%s0 + $0x240] sm:$0xff]
    %v105 = vld [vmem:[%s0 + $0x248] sm:$0xff]
    %v106 = vld [vmem:[%s0 + $0x250] sm:$0xff]
    %v107 = vld [vmem:[%s0 + $0x258] sm:$0xff]
    %v108 = vld [vmem:[%s0 + $0x260] sm:$0xff]
    %v109 = vld [vmem:[%s0 + $0x268] sm:$0xff]
    %v110 = vld [vmem:[%s0 + $0x270] sm:$0xff]
    %v111 = vld [vmem:[%s0 + $0x278] sm:$0xff]
    %v112 = vld [vmem:[%s0 + $0x280] sm:$0xff]
    %v113 = vld [vmem:[%s0 + $0x288] sm:$0xff]
    %v114 = vld [vmem:[%s0 + $0x290] sm:$0xff]
    %v115 = vld [vmem:[%s0 + $0x298] sm:$0xff]
    %v116 = vld [vmem:[%s0 + $0x2a0] sm:$0xff]
    %v117 = vld [vmem:[%s0 + $0x2a8] sm:$0xff]
    %v118 = vld [vmem:[%s0 + $0x2b0] sm:$0xff]
    %v119 = vld [vmem:[%s0 + $0x2b8] sm:$0xff]
    %v120 = vld [vmem:[%s0 + $0x2c0] sm:$0xff]
    %v121 = vld [vmem:[%s0 + $0x2c8] sm:$0xff]
    %v122 = vld [vmem:[%s0 + $0x2d0] sm:$0xff]
    %v123 = vld [vmem:[%s0 + $0x2d8] sm:$0xff]
    %v124 = vld [vmem:[%s0 + $0x2e0] sm:$0xff]
    %v125 = vld [vmem:[%s0 + $0x2e8] sm:$0xff]
    %v126 = vld [vmem:[%s0 + $0x2f0] sm:$0xff]
    %v127 = vld [vmem:[%s0 + $0x2f8] sm:$0xff]
    %v128 = vld [vmem:[%s0 + $0x300] sm:$0xff]
    %v129 = vld [vmem:[%s0 + $0x308] sm:$0xff]
    %v130 = vld [vmem:[%s0 + $0x310] sm:$0xff]
    %v131 = vld [vmem:[%s0 + $0x318] sm:$0xff]
    %v132 = vld [vmem:[%s0 + $0x320] sm:$0xff]
    %v133 = vld [vmem:[%s0 + $0x328] sm:$0xff]
    %v134 = vld [vmem:[%s0 + $0x330] sm:$0xff]
    %v135 = vld [vmem:[%s0 + $0x338] sm:$0xff]
    %v136 = vld [vmem:[%s0 + $0x340] sm:$0xff]
    %v137 = vld [vmem:[%s0 + $0x348] sm:$0xff]
    %v138 = vld [vmem:[%s0 + $0x350] sm:$0xff]
    %v139 = vld [vmem:[%s0 + $0x358] sm:$0xff]
    %v140 = vld [vmem:[%s0 + $0x360] sm:$0xff]
    %v141 = vld [vmem:[%s0 + $0x368] sm:$0xff]
    %v142 = vld [vmem:[%s0 + $0x370] sm:$0xff]
    %v143 = vld [vmem:[%s0 + $0x378] sm:$0xff]
    %v144 = vld [vmem:[%s0 + $0x380] sm:$0xff]
    %v145 = vld [vmem:[%s0 + $0x388] sm:$0xff]
    %v146 = vld [vmem:[%s0 + $0x390] sm:$0xff]
    %v147 = vld [vmem:[%s0 + $0x398] sm:$0xff]
    %v148 = vld [vmem:[%s0 + $0x3a0] sm:$0xff]
    %v149 = vld [vmem:[%s0 + $0x3a8] sm:$0xff]
    %v150 = vld [vmem:[%s0 + $0x3b0] sm:$0xff]
    %v151 = vld [vmem:[%s0 + $0x3b8] sm:$0xff]
    %v152 = vld [vmem:[%s0 + $0x3c0] sm:$0xff]
    %v153 = vld [vmem:[%s0 + $0x3c8] sm:$0xff]
    %v154 = vld [vmem:[%s0 + $0x3d0] sm:$0xff]
    %v155 = vld [vmem:[%s0 + $0x3d8] sm:$0xff]
    %v156 = vld [vmem:[%s0 + $0x3e0] sm:$0xff]
    %v157 = vld [vmem:[%s0 + $0x3e8] sm:$0xff]
    %v158 = vld [vmem:[%s0 + $0x3f0] sm:$0xff]
    %v159 = vld [vmem:[%s0 + $0x3f8] sm:$0xff]
    %v160 = vld [vmem:[%s0 + $0x400] sm:$0xff]
    %v161 = vld [vmem:[%s0 + $0x408] sm:$0xff]
    %v162 = vld [vmem:[%s0 + $0x410] sm:$0xff]
    %v163 = vld [vmem:[%s0 + $0x418] sm:$0xff]
    %v164 = vld [vmem:[%s0 + $0x420] sm:$0xff]
    %v165 = vld [vmem:[%s0 + $0x428] sm:$0xff]
    %v166 = vld [vmem:[%s0 + $0x430] sm:$0xff]
    %v167 = vld [vmem:[%s0 + $0x438] sm:$0xff]
    %v168 = vld [vmem:[%s0 + $0x440] sm:$0xff]
    %v169 = vld [vmem:[%s0 + $0x448] sm:$0xff]
    %v170 = vld [vmem:[%s0 + $0x450] sm:$0xff]
    %v171 = vld [vmem:[%s0 + $0x458] sm:$0xff]
    %v172 = vld [vmem:[%s0 + $0x460] sm:$0xff]
    %v173 = vld [vmem:[%s0 + $0x468] sm:$0xff]
    %v174 = vld [vmem:[%s0 + $0x470] sm:$0xff]
    %v175 = vld [vmem:[%s0 + $0x478] sm:$0xff]
    %v176 = vld [vmem:[%s0 + $0x480] sm:$0xff]
    %v177 = vld [vmem:[%s0 + $0x488] sm:$0xff]
    %v178 = vld [vmem:[%s0 + $0x490] sm:$0xff]
    %v179 = vld [vmem:[%s0 + $0x498] sm:$0xff]
    %v180 = vld [vmem:[%s0 + $0x4a0] sm:$0xff]
    %v181 = vld [vmem:[%s0 + $0x4a8] sm:$0xff]
    %v182 = vld [vmem:[%s0 + $0x4b0] sm:$0xff]
    %v183 = vld [vmem:[%s0 + $0x4b8] sm:$0xff]
    %v184 = vld [vmem:[%s0 + $0x4c0] sm:$0xff]
    %v185 = vld [vmem:[%s0 + $0x4c8] sm:$0xff]
    %v186 = vld [vmem:[%s0 + $0x4d0] sm:$0xff]
    %v187 = vld [vmem:[%s0 + $0x4d8] sm:$0xff]
    %v188 = vld [vmem:[%s0 + $0x4e0] sm:$0xff]
    %v189 = vld [vmem:[%s0 + $0x4e8] sm:$0xff]
    %v190 = vld [vmem:[%s0 + $0x4f0] sm:$0xff]
    %v191 = vld [vmem:[%s0 + $0x4f8] sm:$0xff]
    %v192 = vld [vmem:[%s0 + $0x500] sm:$0xff]
    %v193 = vld [vmem:[%s0 + $0x508] sm:$0xff]
    %v194 = vld [vmem:[%s0 + $0x510] sm:$0xff]
    %v195 = vld [vmem:[%s0 + $0x518] sm:$0xff]
    %v196 = vld [vmem:[%s0 + $0x520] sm:$0xff]
    %v197 = vld [vmem:[%s0 + $0x528] sm:$0xff]
    %v198 = vld [vmem:[%s0 + $0x530] sm:$0xff]
    %v199 = vld [vmem:[%s0 + $0x538] sm:$0xff]
    %v200 = vld [vmem:[%s0 + $0x540] sm:$0xff]
    %v201 = vld [vmem:[%s0 + $0x548] sm:$0xff]
    %v202 = vld [vmem:[%s0 + $0x550] sm:$0xff]
    %v203 = vld [vmem:[%s0 + $0x558] sm:$0xff]
    %v204 = vld [vmem:[%s0 + $0x560] sm:$0xff]
    %v205 = vld [vmem:[%s0 + $0x568] sm:$0xff]
    %v206 = vld [vmem:[%s0 + $0x570] sm:$0xff]
    %v207 = vld [vmem:[%s0 + $0x578] sm:$0xff]
    %v208 = vld [vmem:[%s0 + $0x580] sm:$0xff]
    %v209 = vld [vmem:[%s0 + $0x588] sm:$0xff]
    %v210 = vld [vmem:[%s0 + $0x590] sm:$0xff]
    %v211 = vld [vmem:[%s0 + $0x598] sm:$0xff]
    %v212 = vld [vmem:[%s0 + $0x5a0] sm:$0xff]
    %v213 = vld [vmem:[%s0 + $0x5a8] sm:$0xff]
    %v214 = vld [vmem:[%s0 + $0x5b0] sm:$0xff]
    %v215 = vld [vmem:[%s0 + $0x5b8] sm:$0xff]
    %v216 = vld [vmem:[%s0 + $0x5c0] sm:$0xff]
    %v217 = vld [vmem:[%s0 + $0x5c8] sm:$0xff]
    %v218 = vld [vmem:[%s0 + $0x5d0] sm:$0xff]
    %v219 = vld [vmem:[%s0 + $0x5d8] sm:$0xff]
    %v220 = vld [vmem:[%s0 + $0x5e0] sm:$0xff]
    %v221 = vld [vmem:[%s0 + $0x5e8] sm:$0xff]
    %v222 = vld [vmem:[%s0 + $0x5f0] sm:$0xff]
    %v223 = vld [vmem:[%s0 + $0x5f8] sm:$0xff]
    %v224 = vld [vmem:[%s1] sm:$0xff]
    %v225 = vld [vmem:[%s1 + $0x8] sm:$0xff]
    %v226 = vld [vmem:[%s1 + $0x10] sm:$0xff]
    %v227 = vld [vmem:[%s1 + $0x18] sm:$0xff]
    %v228 = vld [vmem:[%s1 + $0x20] sm:$0xff]
    %v229 = vld [vmem:[%s1 + $0x28] sm:$0xff]
    %v230 = vld [vmem:[%s1 + $0x30] sm:$0xff]
    %v231 = vld [vmem:[%s1 + $0x38] sm:$0xff]
    %v232 = vld [vmem:[%s1 + $0x40] sm:$0xff]
    %v233 = vld [vmem:[%s1 + $0x48] sm:$0xff]
    %v234 = vld [vmem:[%s1 + $0x50] sm:$0xff]
    %v235 = vld [vmem:[%s1 + $0x58] sm:$0xff]
    %v236 = vld [vmem:[%s1 + $0x60] sm:$0xff]
    %v237 = vld [vmem:[%s1 + $0x68] sm:$0xff]
    %v238 = vld [vmem:[%s1 + $0x70] sm:$0xff]
    %v239 = vld [vmem:[%s1 + $0x78] sm:$0xff]
    %v240 = vld [vmem:[%s1 + $0x80] sm:$0xff]
    %v241 = vld [vmem:[%s1 + $0x88] sm:$0xff]
    %v242 = vld [vmem:[%s1 + $0x90] sm:$0xff]
    %v243 = vld [vmem:[%s1 + $0x98] sm:$0xff]
    %v244 = vld [vmem:[%s1 + $0xa0] sm:$0xff]
    %v245 = vld [vmem:[%s1 + $0xa8] sm:$0xff]
    %v246 = vld [vmem:[%s1 + $0xb0] sm:$0xff]
    %v247 = vld [vmem:[%s1 + $0xb8] sm:$0xff]
    %v248 = vld [vmem:[%s1 + $0xc0] sm:$0xff]
    %v249 = vld [vmem:[%s1 + $0xc8] sm:$0xff]
    %v250 = vld [vmem:[%s1 + $0xd0] sm:$0xff]
    %v251 = vld [vmem:[%s1 + $0xd8] sm:$0xff]
    %v252 = vld [vmem:[%s1 + $0xe0] sm:$0xff]
    %v253 = vld [vmem:[%s1 + $0xe8] sm:$0xff]
    %v254 = vld [vmem:[%s1 + $0xf0] sm:$0xff]
    %v255 = vld [vmem:[%s1 + $0xf8] sm:$0xff]
    %v256 = vld [vmem:[%s1 + $0x100] sm:$0xff]
    %v257 = vld [vmem:[%s1 + $0x108] sm:$0xff]
    %v258 = vld [vmem:[%s1 + $0x110] sm:$0xff]
    %v259 = vld [vmem:[%s1 + $0x118] sm:$0xff]
    %v260 = vld [vmem:[%s1 + $0x120] sm:$0xff]
    %v261 = vld [vmem:[%s1 + $0x128] sm:$0xff]
    %v262 = vld [vmem:[%s1 + $0x130] sm:$0xff]
    %v263 = vld [vmem:[%s1 + $0x138] sm:$0xff]
    %v264 = vld [vmem:[%s1 + $0x140] sm:$0xff]
    %v265 = vld [vmem:[%s1 + $0x148] sm:$0xff]
    %v266 = vld [vmem:[%s1 + $0x150] sm:$0xff]
    %v267 = vld [vmem:[%s1 + $0x158] sm:$0xff]
    %v268 = vld [vmem:[%s1 + $0x160] sm:$0xff]
    %v269 = vld [vmem:[%s1 + $0x168] sm:$0xff]
    %v270 = vld [vmem:[%s1 + $0x170] sm:$0xff]
    %v271 = vld [vmem:[%s1 + $0x178] sm:$0xff]
    %s272 = sld [smem:[#allocation2]]
    %s273 = sld [smem:[#allocation2 + $0x1]]
    %275 = vset.pattern.permute.xlu0 0
    %276 = vperm.xlu0 %275, %v224
    %v277 = vpop.permute.xlu0 %276
    %280 = vset.pattern.permute.xlu0 0
    %281 = vperm.xlu0 %280, %v225
    %v282 = vpop.permute.xlu0 %281
    %285 = vset.pattern.permute.xlu0 0
    %286 = vperm.xlu0 %285, %v226
    %v287 = vpop.permute.xlu0 %286
    %290 = vset.pattern.permute.xlu0 0
    %291 = vperm.xlu0 %290, %v227
    %v292 = vpop.permute.xlu0 %291
    %295 = vset.pattern.permute.xlu0 0
    %296 = vperm.xlu0 %295, %v228
    %v297 = vpop.permute.xlu0 %296
    %300 = vset.pattern.permute.xlu0 0
    %301 = vperm.xlu0 %300, %v229
    %v302 = vpop.permute.xlu0 %301
    %305 = vset.pattern.permute.xlu0 0
    %306 = vperm.xlu0 %305, %v230
    %v307 = vpop.permute.xlu0 %306
    %310 = vset.pattern.permute.xlu0 0
    %311 = vperm.xlu0 %310, %v231
    %v312 = vpop.permute.xlu0 %311
    %315 = vset.pattern.permute.xlu0 0
    %316 = vperm.xlu0 %315, %v232
    %v317 = vpop.permute.xlu0 %316
    %320 = vset.pattern.permute.xlu0 0
    %321 = vperm.xlu0 %320, %v233
    %v322 = vpop.permute.xlu0 %321
    %325 = vset.pattern.permute.xlu0 0
    %326 = vperm.xlu0 %325, %v234
    %v327 = vpop.permute.xlu0 %326
    %330 = vset.pattern.permute.xlu0 0
    %331 = vperm.xlu0 %330, %v235
    %v332 = vpop.permute.xlu0 %331
    %335 = vset.pattern.permute.xlu0 0
    %336 = vperm.xlu0 %335, %v236
    %v337 = vpop.permute.xlu0 %336
    %340 = vset.pattern.permute.xlu0 0
    %341 = vperm.xlu0 %340, %v237
    %v342 = vpop.permute.xlu0 %341
    %345 = vset.pattern.permute.xlu0 0
    %346 = vperm.xlu0 %345, %v238
    %v347 = vpop.permute.xlu0 %346
    %350 = vset.pattern.permute.xlu0 0
    %351 = vperm.xlu0 %350, %v239
    %v352 = vpop.permute.xlu0 %351
    %355 = vset.pattern.permute.xlu0 0
    %356 = vperm.xlu0 %355, %v240
    %v357 = vpop.permute.xlu0 %356
    %360 = vset.pattern.permute.xlu0 0
    %361 = vperm.xlu0 %360, %v241
    %v362 = vpop.permute.xlu0 %361
    %365 = vset.pattern.permute.xlu0 0
    %366 = vperm.xlu0 %365, %v242
    %v367 = vpop.permute.xlu0 %366
    %370 = vset.pattern.permute.xlu0 0
    %371 = vperm.xlu0 %370, %v243
    %v372 = vpop.permute.xlu0 %371
    %375 = vset.pattern.permute.xlu0 0
    %376 = vperm.xlu0 %375, %v244
    %v377 = vpop.permute.xlu0 %376
    %380 = vset.pattern.permute.xlu0 0
    %381 = vperm.xlu0 %380, %v245
    %v382 = vpop.permute.xlu0 %381
    %385 = vset.pattern.permute.xlu0 0
    %386 = vperm.xlu0 %385, %v246
    %v387 = vpop.permute.xlu0 %386
    %390 = vset.pattern.permute.xlu0 0
    %391 = vperm.xlu0 %390, %v247
    %v392 = vpop.permute.xlu0 %391
    %395 = vset.pattern.permute.xlu0 0
    %396 = vperm.xlu0 %395, %v248
    %v397 = vpop.permute.xlu0 %396
    %400 = vset.pattern.permute.xlu0 0
    %401 = vperm.xlu0 %400, %v249
    %v402 = vpop.permute.xlu0 %401
    %405 = vset.pattern.permute.xlu0 0
    %406 = vperm.xlu0 %405, %v250
    %v407 = vpop.permute.xlu0 %406
    %410 = vset.pattern.permute.xlu0 0
    %411 = vperm.xlu0 %410, %v251
    %v412 = vpop.permute.xlu0 %411
    %415 = vset.pattern.permute.xlu0 0
    %416 = vperm.xlu0 %415, %v252
    %v417 = vpop.permute.xlu0 %416
    %420 = vset.pattern.permute.xlu0 0
    %421 = vperm.xlu0 %420, %v253
    %v422 = vpop.permute.xlu0 %421
    %425 = vset.pattern.permute.xlu0 0
    %426 = vperm.xlu0 %425, %v254
    %v427 = vpop.permute.xlu0 %426
    %430 = vset.pattern.permute.xlu0 0
    %431 = vperm.xlu0 %430, %v255
    %v432 = vpop.permute.xlu0 %431
    %435 = vset.pattern.permute.xlu0 0
    %436 = vperm.xlu0 %435, %v256
    %v437 = vpop.permute.xlu0 %436
    %440 = vset.pattern.permute.xlu0 0
    %441 = vperm.xlu0 %440, %v257
    %v442 = vpop.permute.xlu0 %441
    %445 = vset.pattern.permute.xlu0 0
    %446 = vperm.xlu0 %445, %v258
    %v447 = vpop.permute.xlu0 %446
    %450 = vset.pattern.permute.xlu0 0
    %451 = vperm.xlu0 %450, %v259
    %v452 = vpop.permute.xlu0 %451
    %455 = vset.pattern.permute.xlu0 0
    %456 = vperm.xlu0 %455, %v260
    %v457 = vpop.permute.xlu0 %456
    %460 = vset.pattern.permute.xlu0 0
    %461 = vperm.xlu0 %460, %v261
    %v462 = vpop.permute.xlu0 %461
    %465 = vset.pattern.permute.xlu0 0
    %466 = vperm.xlu0 %465, %v262
    %v467 = vpop.permute.xlu0 %466
    %470 = vset.pattern.permute.xlu0 0
    %471 = vperm.xlu0 %470, %v263
    %v472 = vpop.permute.xlu0 %471
    %475 = vset.pattern.permute.xlu0 0
    %476 = vperm.xlu0 %475, %v264
    %v477 = vpop.permute.xlu0 %476
    %480 = vset.pattern.permute.xlu0 0
    %481 = vperm.xlu0 %480, %v265
    %v482 = vpop.permute.xlu0 %481
    %485 = vset.pattern.permute.xlu0 0
    %486 = vperm.xlu0 %485, %v266
    %v487 = vpop.permute.xlu0 %486
    %490 = vset.pattern.permute.xlu0 0
    %491 = vperm.xlu0 %490, %v267
    %v492 = vpop.permute.xlu0 %491
    %495 = vset.pattern.permute.xlu0 0
    %496 = vperm.xlu0 %495, %v268
    %v497 = vpop.permute.xlu0 %496
    %500 = vset.pattern.permute.xlu0 0
    %501 = vperm.xlu0 %500, %v269
    %v502 = vpop.permute.xlu0 %501
    %505 = vset.pattern.permute.xlu0 0
    %506 = vperm.xlu0 %505, %v270
    %v507 = vpop.permute.xlu0 %506
    %510 = vset.pattern.permute.xlu0 0
    %511 = vperm.xlu0 %510, %v271
    %v512 = vpop.permute.xlu0 %511
    %v514 = vmul.f32 %v32, %v277
    %v515 = vmul.f32 %v33, %v277
    %v516 = vmul.f32 %v34, %v282
    %v517 = vmul.f32 %v35, %v282
    %v518 = vmul.f32 %v36, %v287
    %v519 = vmul.f32 %v37, %v287
    %v520 = vmul.f32 %v38, %v292
    %v521 = vmul.f32 %v39, %v292
    %v522 = vmul.f32 %v40, %v297
    %v523 = vmul.f32 %v41, %v297
    %v524 = vmul.f32 %v42, %v302
    %v525 = vmul.f32 %v43, %v302
    %v526 = vmul.f32 %v44, %v307
    %v527 = vmul.f32 %v45, %v307
    %v528 = vmul.f32 %v46, %v312
    %v529 = vmul.f32 %v47, %v312
    %v530 = vmul.f32 %v48, %v317
    %v531 = vmul.f32 %v49, %v317
    %v532 = vmul.f32 %v50, %v322
    %v533 = vmul.f32 %v51, %v322
    %v534 = vmul.f32 %v52, %v327
    %v535 = vmul.f32 %v53, %v327
    %v536 = vmul.f32 %v54, %v332
    %v537 = vmul.f32 %v55, %v332
    %v538 = vmul.f32 %v56, %v337
    %v539 = vmul.f32 %v57, %v337
    %v540 = vmul.f32 %v58, %v342
    %v541 = vmul.f32 %v59, %v342
    %v542 = vmul.f32 %v60, %v347
    %v543 = vmul.f32 %v61, %v347
    %v544 = vmul.f32 %v62, %v352
    %v545 = vmul.f32 %v63, %v352
    %v546 = vmul.f32 %v64, %v357
    %v547 = vmul.f32 %v65, %v357
    %v548 = vmul.f32 %v66, %v362
    %v549 = vmul.f32 %v67, %v362
    %v550 = vmul.f32 %v68, %v367
    %v551 = vmul.f32 %v69, %v367
    %v552 = vmul.f32 %v70, %v372
    %v553 = vmul.f32 %v71, %v372
    %v554 = vmul.f32 %v72, %v377
    %v555 = vmul.f32 %v73, %v377
    %v556 = vmul.f32 %v74, %v382
    %v557 = vmul.f32 %v75, %v382
    %v558 = vmul.f32 %v76, %v387
    %v559 = vmul.f32 %v77, %v387
    %v560 = vmul.f32 %v78, %v392
    %v561 = vmul.f32 %v79, %v392
    %v562 = vmul.f32 %v80, %v397
    %v563 = vmul.f32 %v81, %v397
    %v564 = vmul.f32 %v82, %v402
    %v565 = vmul.f32 %v83, %v402
    %v566 = vmul.f32 %v84, %v407
    %v567 = vmul.f32 %v85, %v407
    %v568 = vmul.f32 %v86, %v412
    %v569 = vmul.f32 %v87, %v412
    %v570 = vmul.f32 %v88, %v417
    %v571 = vmul.f32 %v89, %v417
    %v572 = vmul.f32 %v90, %v422
    %v573 = vmul.f32 %v91, %v422
    %v574 = vmul.f32 %v92, %v427
    %v575 = vmul.f32 %v93, %v427
    %v576 = vmul.f32 %v94, %v432
    %v577 = vmul.f32 %v95, %v432
    %v578 = vmul.f32 %v96, %v437
    %v579 = vmul.f32 %v97, %v437
    %v580 = vmul.f32 %v98, %v442
    %v581 = vmul.f32 %v99, %v442
    %v582 = vmul.f32 %v100, %v447
    %v583 = vmul.f32 %v101, %v447
    %v584 = vmul.f32 %v102, %v452
    %v585 = vmul.f32 %v103, %v452
    %v586 = vmul.f32 %v104, %v457
    %v587 = vmul.f32 %v105, %v457
    %v588 = vmul.f32 %v106, %v462
    %v589 = vmul.f32 %v107, %v462
    %v590 = vmul.f32 %v108, %v467
    %v591 = vmul.f32 %v109, %v467
    %v592 = vmul.f32 %v110, %v472
    %v593 = vmul.f32 %v111, %v472
    %v594 = vmul.f32 %v112, %v477
    %v595 = vmul.f32 %v113, %v477
    %v596 = vmul.f32 %v114, %v482
    %v597 = vmul.f32 %v115, %v482
    %v598 = vmul.f32 %v116, %v487
    %v599 = vmul.f32 %v117, %v487
    %v600 = vmul.f32 %v118, %v492
    %v601 = vmul.f32 %v119, %v492
    %v602 = vmul.f32 %v120, %v497
    %v603 = vmul.f32 %v121, %v497
    %v604 = vmul.f32 %v122, %v502
    %v605 = vmul.f32 %v123, %v502
    %v606 = vmul.f32 %v124, %v507
    %v607 = vmul.f32 %v125, %v507
    %v608 = vmul.f32 %v126, %v512
    %v609 = vmul.f32 %v127, %v512
    %v610 = vmul.f32 %v128, %v277
    %v611 = vmul.f32 %v129, %v277
    %v612 = vmul.f32 %v130, %v282
    %v613 = vmul.f32 %v131, %v282
    %v614 = vmul.f32 %v132, %v287
    %v615 = vmul.f32 %v133, %v287
    %v616 = vmul.f32 %v134, %v292
    %v617 = vmul.f32 %v135, %v292
    %v618 = vmul.f32 %v136, %v297
    %v619 = vmul.f32 %v137, %v297
    %v620 = vmul.f32 %v138, %v302
    %v621 = vmul.f32 %v139, %v302
    %v622 = vmul.f32 %v140, %v307
    %v623 = vmul.f32 %v141, %v307
    %v624 = vmul.f32 %v142, %v312
    %v625 = vmul.f32 %v143, %v312
    %v626 = vmul.f32 %v144, %v317
    %v627 = vmul.f32 %v145, %v317
    %v628 = vmul.f32 %v146, %v322
    %v629 = vmul.f32 %v147, %v322
    %v630 = vmul.f32 %v148, %v327
    %v631 = vmul.f32 %v149, %v327
    %v632 = vmul.f32 %v150, %v332
    %v633 = vmul.f32 %v151, %v332
    %v634 = vmul.f32 %v152, %v337
    %v635 = vmul.f32 %v153, %v337
    %v636 = vmul.f32 %v154, %v342
    %v637 = vmul.f32 %v155, %v342
    %v638 = vmul.f32 %v156, %v347
    %v639 = vmul.f32 %v157, %v347
    %v640 = vmul.f32 %v158, %v352
    %v641 = vmul.f32 %v159, %v352
    %v642 = vmul.f32 %v160, %v357
    %v643 = vmul.f32 %v161, %v357
    %v644 = vmul.f32 %v162, %v362
    %v645 = vmul.f32 %v163, %v362
    %v646 = vmul.f32 %v164, %v367
    %v647 = vmul.f32 %v165, %v367
    %v648 = vmul.f32 %v166, %v372
    %v649 = vmul.f32 %v167, %v372
    %v650 = vmul.f32 %v168, %v377
    %v651 = vmul.f32 %v169, %v377
    %v652 = vmul.f32 %v170, %v382
    %v653 = vmul.f32 %v171, %v382
    %v654 = vmul.f32 %v172, %v387
    %v655 = vmul.f32 %v173, %v387
    %v656 = vmul.f32 %v174, %v392
    %v657 = vmul.f32 %v175, %v392
    %v658 = vmul.f32 %v176, %v397
    %v659 = vmul.f32 %v177, %v397
    %v660 = vmul.f32 %v178, %v402
    %v661 = vmul.f32 %v179, %v402
    %v662 = vmul.f32 %v180, %v407
    %v663 = vmul.f32 %v181, %v407
    %v664 = vmul.f32 %v182, %v412
    %v665 = vmul.f32 %v183, %v412
    %v666 = vmul.f32 %v184, %v417
    %v667 = vmul.f32 %v185, %v417
    %v668 = vmul.f32 %v186, %v422
    %v669 = vmul.f32 %v187, %v422
    %v670 = vmul.f32 %v188, %v427
    %v671 = vmul.f32 %v189, %v427
    %v672 = vmul.f32 %v190, %v432
    %v673 = vmul.f32 %v191, %v432
    %v674 = vmul.f32 %v192, %v437
    %v675 = vmul.f32 %v193, %v437
    %v676 = vmul.f32 %v194, %v442
    %v677 = vmul.f32 %v195, %v442
    %v678 = vmul.f32 %v196, %v447
    %v679 = vmul.f32 %v197, %v447
    %v680 = vmul.f32 %v198, %v452
    %v681 = vmul.f32 %v199, %v452
    %v682 = vmul.f32 %v200, %v457
    %v683 = vmul.f32 %v201, %v457
    %v684 = vmul.f32 %v202, %v462
    %v685 = vmul.f32 %v203, %v462
    %v686 = vmul.f32 %v204, %v467
    %v687 = vmul.f32 %v205, %v467
    %v688 = vmul.f32 %v206, %v472
    %v689 = vmul.f32 %v207, %v472
    %v690 = vmul.f32 %v208, %v477
    %v691 = vmul.f32 %v209, %v477
    %v692 = vmul.f32 %v210, %v482
    %v693 = vmul.f32 %v211, %v482
    %v694 = vmul.f32 %v212, %v487
    %v695 = vmul.f32 %v213, %v487
    %v696 = vmul.f32 %v214, %v492
    %v697 = vmul.f32 %v215, %v492
    %v698 = vmul.f32 %v216, %v497
    %v699 = vmul.f32 %v217, %v497
    %v700 = vmul.f32 %v218, %v502
    %v701 = vmul.f32 %v219, %v502
    %v702 = vmul.f32 %v220, %v507
    %v703 = vmul.f32 %v221, %v507
    %v704 = vmul.f32 %v222, %v512
    %v705 = vmul.f32 %v223, %v512
    %v706 = vadd.f32 %v514, %v516
    %v707 = vadd.f32 %v706, %v518
    %v708 = vadd.f32 %v707, %v520
    %v709 = vadd.f32 %v708, %v522
    %v710 = vadd.f32 %v709, %v524
    %v711 = vadd.f32 %v710, %v526
    %v712 = vadd.f32 %v711, %v528
    %v713 = vadd.f32 %v712, %v530
    %v714 = vadd.f32 %v713, %v532
    %v715 = vadd.f32 %v714, %v534
    %v716 = vadd.f32 %v715, %v536
    %v717 = vadd.f32 %v716, %v538
    %v718 = vadd.f32 %v717, %v540
    %v719 = vadd.f32 %v718, %v542
    %v720 = vadd.f32 %v719, %v544
    %v721 = vadd.f32 %v720, %v546
    %v722 = vadd.f32 %v721, %v548
    %v723 = vadd.f32 %v722, %v550
    %v724 = vadd.f32 %v723, %v552
    %v725 = vadd.f32 %v724, %v554
    %v726 = vadd.f32 %v725, %v556
    %v727 = vadd.f32 %v726, %v558
    %v728 = vadd.f32 %v727, %v560
    %v729 = vadd.f32 %v728, %v562
    %v730 = vadd.f32 %v729, %v564
    %v731 = vadd.f32 %v730, %v566
    %v732 = vadd.f32 %v731, %v568
    %v733 = vadd.f32 %v732, %v570
    %v734 = vadd.f32 %v733, %v572
    %v735 = vadd.f32 %v734, %v574
    %v736 = vadd.f32 %v735, %v576
    %v737 = vadd.f32 %v736, %v578
    %v738 = vadd.f32 %v737, %v580
    %v739 = vadd.f32 %v738, %v582
    %v740 = vadd.f32 %v739, %v584
    %v741 = vadd.f32 %v740, %v586
    %v742 = vadd.f32 %v741, %v588
    %v743 = vadd.f32 %v742, %v590
    %v744 = vadd.f32 %v743, %v592
    %v745 = vadd.f32 %v744, %v594
    %v746 = vadd.f32 %v745, %v596
    %v747 = vadd.f32 %v746, %v598
    %v748 = vadd.f32 %v747, %v600
    %v749 = vadd.f32 %v748, %v602
    %v750 = vadd.f32 %v749, %v604
    %v751 = vadd.f32 %v750, %v606
    %v752 = vadd.f32 %v751, %v608
    %v753 = vrot.slane %v752, 4
    %v754 = vadd.f32 %v752, %v753
    %v755 = vrot.slane %v754, 2
    %v756 = vadd.f32 %v754, %v755
    %v757 = vrot.slane %v756, 1
    %v758 = vadd.f32 %v756, %v757
    %vm759 = vcmask 556032
    %v760 = vsel %vm759, %v515, 0.0
    %v761 = vsel %vm759, %v517, 0.0
    %v762 = vadd.f32 %v760, %v761
    %v763 = vsel %vm759, %v519, 0.0
    %v764 = vadd.f32 %v762, %v763
    %v765 = vsel %vm759, %v521, 0.0
    %v766 = vadd.f32 %v764, %v765
    %v767 = vsel %vm759, %v523, 0.0
    %v768 = vadd.f32 %v766, %v767
    %v769 = vsel %vm759, %v525, 0.0
    %v770 = vadd.f32 %v768, %v769
    %v771 = vsel %vm759, %v527, 0.0
    %v772 = vadd.f32 %v770, %v771
    %v773 = vsel %vm759, %v529, 0.0
    %v774 = vadd.f32 %v772, %v773
    %v775 = vsel %vm759, %v531, 0.0
    %v776 = vadd.f32 %v774, %v775
    %v777 = vsel %vm759, %v533, 0.0
    %v778 = vadd.f32 %v776, %v777
    %v779 = vsel %vm759, %v535, 0.0
    %v780 = vadd.f32 %v778, %v779
    %v781 = vsel %vm759, %v537, 0.0
    %v782 = vadd.f32 %v780, %v781
    %v783 = vsel %vm759, %v539, 0.0
    %v784 = vadd.f32 %v782, %v783
    %v785 = vsel %vm759, %v541, 0.0
    %v786 = vadd.f32 %v784, %v785
    %v787 = vsel %vm759, %v543, 0.0
    %v788 = vadd.f32 %v786, %v787
    %v789 = vsel %vm759, %v545, 0.0
    %v790 = vadd.f32 %v788, %v789
    %v791 = vsel %vm759, %v547, 0.0
    %v792 = vadd.f32 %v790, %v791
    %v793 = vsel %vm759, %v549, 0.0
    %v794 = vadd.f32 %v792, %v793
    %v795 = vsel %vm759, %v551, 0.0
    %v796 = vadd.f32 %v794, %v795
    %v797 = vsel %vm759, %v553, 0.0
    %v798 = vadd.f32 %v796, %v797
    %v799 = vsel %vm759, %v555, 0.0
    %v800 = vadd.f32 %v798, %v799
    %v801 = vsel %vm759, %v557, 0.0
    %v802 = vadd.f32 %v800, %v801
    %v803 = vsel %vm759, %v559, 0.0
    %v804 = vadd.f32 %v802, %v803
    %v805 = vsel %vm759, %v561, 0.0
    %v806 = vadd.f32 %v804, %v805
    %v807 = vsel %vm759, %v563, 0.0
    %v808 = vadd.f32 %v806, %v807
    %v809 = vsel %vm759, %v565, 0.0
    %v810 = vadd.f32 %v808, %v809
    %v811 = vsel %vm759, %v567, 0.0
    %v812 = vadd.f32 %v810, %v811
    %v813 = vsel %vm759, %v569, 0.0
    %v814 = vadd.f32 %v812, %v813
    %v815 = vsel %vm759, %v571, 0.0
    %v816 = vadd.f32 %v814, %v815
    %v817 = vsel %vm759, %v573, 0.0
    %v818 = vadd.f32 %v816, %v817
    %v819 = vsel %vm759, %v575, 0.0
    %v820 = vadd.f32 %v818, %v819
    %v821 = vsel %vm759, %v577, 0.0
    %v822 = vadd.f32 %v820, %v821
    %v823 = vsel %vm759, %v579, 0.0
    %v824 = vadd.f32 %v822, %v823
    %v825 = vsel %vm759, %v581, 0.0
    %v826 = vadd.f32 %v824, %v825
    %v827 = vsel %vm759, %v583, 0.0
    %v828 = vadd.f32 %v826, %v827
    %v829 = vsel %vm759, %v585, 0.0
    %v830 = vadd.f32 %v828, %v829
    %v831 = vsel %vm759, %v587, 0.0
    %v832 = vadd.f32 %v830, %v831
    %v833 = vsel %vm759, %v589, 0.0
    %v834 = vadd.f32 %v832, %v833
    %v835 = vsel %vm759, %v591, 0.0
    %v836 = vadd.f32 %v834, %v835
    %v837 = vsel %vm759, %v593, 0.0
    %v838 = vadd.f32 %v836, %v837
    %v839 = vsel %vm759, %v595, 0.0
    %v840 = vadd.f32 %v838, %v839
    %v841 = vsel %vm759, %v597, 0.0
    %v842 = vadd.f32 %v840, %v841
    %v843 = vsel %vm759, %v599, 0.0
    %v844 = vadd.f32 %v842, %v843
    %v845 = vsel %vm759, %v601, 0.0
    %v846 = vadd.f32 %v844, %v845
    %v847 = vsel %vm759, %v603, 0.0
    %v848 = vadd.f32 %v846, %v847
    %v849 = vsel %vm759, %v605, 0.0
    %v850 = vadd.f32 %v848, %v849
    %v851 = vsel %vm759, %v607, 0.0
    %v852 = vadd.f32 %v850, %v851
    %v853 = vsel %vm759, %v609, 0.0
    %v854 = vadd.f32 %v852, %v853
    %v855 = vrot.slane %v854, 4
    %v856 = vadd.f32 %v854, %v855
    %v857 = vrot.slane %v856, 2
    %v858 = vadd.f32 %v856, %v857
    %v859 = vrot.slane %v858, 1
    %v860 = vadd.f32 %v858, %v859
    %v861 = vadd.f32 %v610, %v612
    %v862 = vadd.f32 %v861, %v614
    %v863 = vadd.f32 %v862, %v616
    %v864 = vadd.f32 %v863, %v618
    %v865 = vadd.f32 %v864, %v620
    %v866 = vadd.f32 %v865, %v622
    %v867 = vadd.f32 %v866, %v624
    %v868 = vadd.f32 %v867, %v626
    %v869 = vadd.f32 %v868, %v628
    %v870 = vadd.f32 %v869, %v630
    %v871 = vadd.f32 %v870, %v632
    %v872 = vadd.f32 %v871, %v634
    %v873 = vadd.f32 %v872, %v636
    %v874 = vadd.f32 %v873, %v638
    %v875 = vadd.f32 %v874, %v640
    %v876 = vadd.f32 %v875, %v642
    %v877 = vadd.f32 %v876, %v644
    %v878 = vadd.f32 %v877, %v646
    %v879 = vadd.f32 %v878, %v648
    %v880 = vadd.f32 %v879, %v650
    %v881 = vadd.f32 %v880, %v652
    %v882 = vadd.f32 %v881, %v654
    %v883 = vadd.f32 %v882, %v656
    %v884 = vadd.f32 %v883, %v658
    %v885 = vadd.f32 %v884, %v660
    %v886 = vadd.f32 %v885, %v662
    %v887 = vadd.f32 %v886, %v664
    %v888 = vadd.f32 %v887, %v666
    %v889 = vadd.f32 %v888, %v668
    %v890 = vadd.f32 %v889, %v670
    %v891 = vadd.f32 %v890, %v672
    %v892 = vadd.f32 %v891, %v674
    %v893 = vadd.f32 %v892, %v676
    %v894 = vadd.f32 %v893, %v678
    %v895 = vadd.f32 %v894, %v680
    %v896 = vadd.f32 %v895, %v682
    %v897 = vadd.f32 %v896, %v684
    %v898 = vadd.f32 %v897, %v686
    %v899 = vadd.f32 %v898, %v688
    %v900 = vadd.f32 %v899, %v690
    %v901 = vadd.f32 %v900, %v692
    %v902 = vadd.f32 %v901, %v694
    %v903 = vadd.f32 %v902, %v696
    %v904 = vadd.f32 %v903, %v698
    %v905 = vadd.f32 %v904, %v700
    %v906 = vadd.f32 %v905, %v702
    %v907 = vadd.f32 %v906, %v704
    %v908 = vrot.slane %v907, 4
    %v909 = vadd.f32 %v907, %v908
    %v910 = vrot.slane %v909, 2
    %v911 = vadd.f32 %v909, %v910
    %v912 = vrot.slane %v911, 1
    %v913 = vadd.f32 %v911, %v912
    %v914 = vsel %vm759, %v611, 0.0
    %v915 = vsel %vm759, %v613, 0.0
    %v916 = vadd.f32 %v914, %v915
    %v917 = vsel %vm759, %v615, 0.0
    %v918 = vadd.f32 %v916, %v917
    %v919 = vsel %vm759, %v617, 0.0
    %v920 = vadd.f32 %v918, %v919
    %v921 = vsel %vm759, %v619, 0.0
    %v922 = vadd.f32 %v920, %v921
    %v923 = vsel %vm759, %v621, 0.0
    %v924 = vadd.f32 %v922, %v923
    %v925 = vsel %vm759, %v623, 0.0
    %v926 = vadd.f32 %v924, %v925
    %v927 = vsel %vm759, %v625, 0.0
    %v928 = vadd.f32 %v926, %v927
    %v929 = vsel %vm759, %v627, 0.0
    %v930 = vadd.f32 %v928, %v929
    %v931 = vsel %vm759, %v629, 0.0
    %v932 = vadd.f32 %v930, %v931
    %v933 = vsel %vm759, %v631, 0.0
    %v934 = vadd.f32 %v932, %v933
    %v935 = vsel %vm759, %v633, 0.0
    %v936 = vadd.f32 %v934, %v935
    %v937 = vsel %vm759, %v635, 0.0
    %v938 = vadd.f32 %v936, %v937
    %v939 = vsel %vm759, %v637, 0.0
    %v940 = vadd.f32 %v938, %v939
    %v941 = vsel %vm759, %v639, 0.0
    %v942 = vadd.f32 %v940, %v941
    %v943 = vsel %vm759, %v641, 0.0
    %v944 = vadd.f32 %v942, %v943
    %v945 = vsel %vm759, %v643, 0.0
    %v946 = vadd.f32 %v944, %v945
    %v947 = vsel %vm759, %v645, 0.0
    %v948 = vadd.f32 %v946, %v947
    %v949 = vsel %vm759, %v647, 0.0
    %v950 = vadd.f32 %v948, %v949
    %v951 = vsel %vm759, %v649, 0.0
    %v952 = vadd.f32 %v950, %v951
    %v953 = vsel %vm759, %v651, 0.0
    %v954 = vadd.f32 %v952, %v953
    %v955 = vsel %vm759, %v653, 0.0
    %v956 = vadd.f32 %v954, %v955
    %v957 = vsel %vm759, %v655, 0.0
    %v958 = vadd.f32 %v956, %v957
    %v959 = vsel %vm759, %v657, 0.0
    %v960 = vadd.f32 %v958, %v959
    %v961 = vsel %vm759, %v659, 0.0
    %v962 = vadd.f32 %v960, %v961
    %v963 = vsel %vm759, %v661, 0.0
    %v964 = vadd.f32 %v962, %v963
    %v965 = vsel %vm759, %v663, 0.0
    %v966 = vadd.f32 %v964, %v965
    %v967 = vsel %vm759, %v665, 0.0
    %v968 = vadd.f32 %v966, %v967
    %v969 = vsel %vm759, %v667, 0.0
    %v970 = vadd.f32 %v968, %v969
    %v971 = vsel %vm759, %v669, 0.0
    %v972 = vadd.f32 %v970, %v971
    %v973 = vsel %vm759, %v671, 0.0
    %v974 = vadd.f32 %v972, %v973
    %v975 = vsel %vm759, %v673, 0.0
    %v976 = vadd.f32 %v974, %v975
    %v977 = vsel %vm759, %v675, 0.0
    %v978 = vadd.f32 %v976, %v977
    %v979 = vsel %vm759, %v677, 0.0
    %v980 = vadd.f32 %v978, %v979
    %v981 = vsel %vm759, %v679, 0.0
    %v982 = vadd.f32 %v980, %v981
    %v983 = vsel %vm759, %v681, 0.0
    %v984 = vadd.f32 %v982, %v983
    %v985 = vsel %vm759, %v683, 0.0
    %v986 = vadd.f32 %v984, %v985
    %v987 = vsel %vm759, %v685, 0.0
    %v988 = vadd.f32 %v986, %v987
    %v989 = vsel %vm759, %v687, 0.0
    %v990 = vadd.f32 %v988, %v989
    %v991 = vsel %vm759, %v689, 0.0
    %v992 = vadd.f32 %v990, %v991
    %v993 = vsel %vm759, %v691, 0.0
    %v994 = vadd.f32 %v992, %v993
    %v995 = vsel %vm759, %v693, 0.0
    %v996 = vadd.f32 %v994, %v995
    %v997 = vsel %vm759, %v695, 0.0
    %v998 = vadd.f32 %v996, %v997
    %v999 = vsel %vm759, %v697, 0.0
    %v1000 = vadd.f32 %v998, %v999
    %v1001 = vsel %vm759, %v699, 0.0
    %v1002 = vadd.f32 %v1000, %v1001
    %v1003 = vsel %vm759, %v701, 0.0
    %v1004 = vadd.f32 %v1002, %v1003
    %v1005 = vsel %vm759, %v703, 0.0
    %v1006 = vadd.f32 %v1004, %v1005
    %v1007 = vsel %vm759, %v705, 0.0
    %v1008 = vadd.f32 %v1006, %v1007
    %v1009 = vrot.slane %v1008, 4
    %v1010 = vadd.f32 %v1008, %v1009
    %v1011 = vrot.slane %v1010, 2
    %v1012 = vadd.f32 %v1010, %v1011
    %v1013 = vrot.slane %v1012, 1
    %v1014 = vadd.f32 %v1012, %v1013
    %v1015 = vstv %s272
    %v1016 = vadd.f32 %v758, %v1015
    %v1017 = vadd.f32 %v860, %v1015
    %v1018 = vadd.f32 %v913, %v1015
    %v1019 = vadd.f32 %v1014, %v1015
    %v1020 = vxor.u32 %v1016, 2147483648
    %v1021 = vxor.u32 %v1017, 2147483648
    %v1022 = vxor.u32 %v1018, 2147483648
    %v1023 = vxor.u32 %v1019, 2147483648
    %v1024 = vmul.f32 %v1020, 1.442695
    %v1025 = vpow.pop %v1024
    %v1026 = vmul.f32 %v1021, 1.442695
    %v1027 = vpow.pop %v1026
    %v1028 = vmul.f32 %v1022, 1.442695
    %v1029 = vpow.pop %v1028
    %v1030 = vmul.f32 %v1023, 1.442695
    %v1031 = vpow.pop %v1030
    %v1032 = vadd.f32 %v1025, 1.0
    %v1033 = vadd.f32 %v1027, 1.0
    %v1034 = vadd.f32 %v1029, 1.0
    %v1035 = vadd.f32 %v1031, 1.0
    %v1036 = vrcp.pop %v1032
    %v1037 = vmul.f32 1.0, %v1036
    %v1038 = vrcp.pop %v1033
    %v1039 = vmul.f32 1.0, %v1038
    %v1040 = vrcp.pop %v1034
    %v1041 = vmul.f32 1.0, %v1040
    %v1042 = vrcp.pop %v1035
    %v1043 = vmul.f32 1.0, %v1042
    %v1048 = vcombine.low %v1037, %v1039
    %v1050 = vunpack.c.l.s4 1983009808
    %v1051 = vunpack.c.0.s8 %v1050
    %v1052 = vlaneseq
    %v1053 = vshrl.u32 %v1052, 7
    %v1054 = vsub.s32 %v1051, %v1053
    %v1055 = vrot.slane %v1048, %v1054
    %v1056 = vcombine.low %v1041, %v1043
    %v1058 = vunpack.c.l.s4 1983009808
    %v1059 = vunpack.c.0.s8 %v1058
    %v1060 = vlaneseq
    %v1061 = vshrl.u32 %v1060, 7
    %v1062 = vsub.s32 %v1059, %v1061
    %v1063 = vrot.slane %v1056, %v1062
    %vm1064 = vcmask 1044484
    %v1065 = vsel %vm1064, %v1055, %v1055
    %vm1066 = vcmask 1046534
    %v1067 = vsel %vm1066, %v1055, %v1065
    %v1068 = vrot.slane %v1063, 7
    %vm1069 = vcmask 1041409
    %v1070 = vsel %vm1069, %v1068, %v1067
    %vm1071 = vcmask 1043459
    %v1072 = vsel %vm1071, %v1068, %v1070
    %vm1073 = vcmask 1045509
    %v1074 = vsel %vm1073, %v1068, %v1072
    %vm1075 = vcmask 1047559
    %v1076 = vsel %vm1075, %v1068, %v1074
    %vm1078 = vcmask 1041408
    %vm1079 = vcmask 551938
    %vm1080 = vmor %vm1079, %vm1078
    %1081 = vst.msk [vmem:[%s4] sm:$0xf] %vm1080, %v1076
    %v1082 = vld [vmem:[%s2] sm:$0x3]
    %v1084 = vlaneseq
    %v1085 = vshrl.u32 %v1084, 7
    %v1086 = vsub.s32 0, %v1085
    %v1087 = vrot.slane %v1082, %v1086
    %v1088 = vlaneseq
    %v1089 = vshrl.u32 %v1088, 7
    %v1090 = vsub.s32 1, %v1089
    %v1091 = vrot.slane %v1082, %v1090
    %v1094 = vmul.f32 %v1037, %v1087
    %v1095 = vmul.f32 %v1039, %v1091
    %v1096 = vmul.f32 %v1041, %v1087
    %v1097 = vmul.f32 %v1043, %v1091
    %v1102 = vrot.slane %v1096, 7
    %v1103 = vsel %vm1069, %v1102, %v1094
    %v1104 = vrot.slane %v1097, 7
    %v1105 = vsel %vm1069, %v1104, %v1095
    %v1108 = vsel %vm1078, %v1103, 0.0
    %vm1109 = vcmask 549888
    %v1110 = vsel %vm1109, %v1105, 0.0
    %v1111 = vadd.f32 %v1108, %v1110
    %1112 = vadd.xlane.f32.xlu0 %v1111
    %v1113 = vpop.xlane.xlu0 %1112
    %v1114 = vstv %s273
    %v1115 = vadd.f32 %v1113, %v1114
    %v1116 = vxor.u32 %v1115, 2147483648
    %v1117 = vmul.f32 %v1116, 1.442695
    %v1118 = vpow.pop %v1117
    %v1119 = vadd.f32 %v1118, 1.0
    %v1120 = vrcp.pop %v1119
    %v1121 = vmul.f32 1.0, %v1120
    %vm1122 = vcmask 1024
    %1123 = vst.msk [vmem:[%s5] sm:$0x3] %vm1122, %v1121
    // Predicated region
    $region22: #{_deep_pix_bis_head_impl.1} parent=1 // pred_check
      _
    $region23: #{_deep_pix_bis_head_impl.1} parent=1 // pred_check_branch
      %1125 = sbr.rel (0) target = $region25
    $region24: #{_deep_pix_bis_head_impl.1} parent=1 // pred_region
      _
    $region25: #{_deep_pix_bis_head_impl.1} parent=1 // pred_fallthru
      _
    // Predicated region
    $region26: #{_deep_pix_bis_head_impl.1} parent=1 // pred_check
      _
    $region27: #{_deep_pix_bis_head_impl.1} parent=1 // pred_check_branch
      %1127 = sbr.rel (0) target = $region29
    $region28: #{_deep_pix_bis_head_impl.1} parent=1 // pred_region
      _
    $region29: #{_deep_pix_bis_head_impl.1} parent=1 // pred_fallthru
      _
    // Predicated region
    $region30: #{_deep_pix_bis_head_impl.1} parent=1 // pred_check
      _
    $region31: #{_deep_pix_bis_head_impl.1} parent=1 // pred_check_branch
      %1129 = sbr.rel (0) target = $region33
    $region32: #{_deep_pix_bis_head_impl.1} parent=1 // pred_region
      _
    $region33: #{_deep_pix_bis_head_impl.1} parent=1 // pred_fallthru
      _
    // Predicated region
    $region34: #{_deep_pix_bis_head_impl.1} parent=1 // pred_check
      _
    $region35: #{_deep_pix_bis_head_impl.1} parent=1 // pred_check_branch
      %1131 = sbr.rel (0) target = $region37
    $region36: #{_deep_pix_bis_head_impl.1} parent=1 // pred_region
      _
    $region37: #{_deep_pix_bis_head_impl.1} parent=1 // pred_fallthru
      _
    %1132 = vsyncpa [#allocation3], 1

</llo_original>
